<compile_context>
chip_gen: v5e
topology: v5e:2x2
jax: 0.10.0
libtpu: 0.0.40
codegen_flags: <defaults>
</compile_context>

<pallas_src>
import functools

import jax
import jax.numpy as jnp
import numpy as np
from jax.experimental import pallas as pl
from jax.experimental.pallas import tpu as pltpu


# Per-block fp32 byte budget: double-buffered in+out blocks plus in-kernel fp32
# temporaries stay well under v5e's 16 MiB scoped-VMEM default and far under
# v7x's 64 MiB physical VMEM, while being big enough (~85% HBM roofline tiles).
_BLOCK_BUDGET_BYTES = 2 * 1024 * 1024
_MAX_ROW_TILE = 2048     # rows on the sublane axis (channels_last kernel)
_MAX_LANE_TILE = 4096    # pixels on the lane axis (channels_first kernel)
_VMEM_LIMIT_BYTES = 32 * 1024 * 1024


def _pick_row_tile(rows, C):
    """Largest multiple-of-8 row tile under the VMEM budget, keeping >=2 steps."""
    per_row = C * 4  # fp32 compute inside the kernel
    tile = min(_MAX_ROW_TILE, max(8, _BLOCK_BUDGET_BYTES // per_row))
    tile = max(8, (tile // 8) * 8)
    # Keep at least two grid steps so v7x's two TensorCores both get work.
    if rows >= 16 and tile * 2 > rows:
        tile = max(8, ((-(-rows // 2)) // 8) * 8)
    if tile >= rows:
        tile = rows  # full extent is always a legal block shape
    return tile


def _pick_hw_tile(hw, C):
    """Largest multiple-of-128 lane tile under the VMEM budget."""
    per_lane = C * 4
    tile = min(_MAX_LANE_TILE, max(128, _BLOCK_BUDGET_BYTES // per_lane))
    tile = max(128, (tile // 128) * 128)
    if tile >= hw:
        tile = hw  # full extent is always a legal block shape
    return tile


def _ln_rows_kernel(x_ref, w_ref, b_ref, o_ref, *, eps):
    # x_ref: (tile_rows, C); w_ref/b_ref: (1, C). Normalize over the lane axis.
    x = x_ref[...].astype(jnp.float32)
    mean = jnp.mean(x, axis=-1, keepdims=True)
    mean_sq = jnp.mean(x * x, axis=-1, keepdims=True)
    var = jnp.maximum(mean_sq - mean * mean, 0.0)     # biased variance, 1 pass
    inv = jax.lax.rsqrt(var + eps)
    w = w_ref[...].astype(jnp.float32)
    b = b_ref[...].astype(jnp.float32)
    scale = inv * w
    o_ref[...] = (x * scale + (b - mean * scale)).astype(o_ref.dtype)


def _ln_channels_kernel(x_ref, w_ref, b_ref, o_ref, *, eps):
    # x_ref: (1, C, tile_hw); w_ref/b_ref: (1, C, 1). Normalize over channels.
    x = x_ref[...].astype(jnp.float32)
    mean = jnp.mean(x, axis=1, keepdims=True)          # (1, 1, tile_hw)
    mean_sq = jnp.mean(x * x, axis=1, keepdims=True)
    var = jnp.maximum(mean_sq - mean * mean, 0.0)
    inv = jax.lax.rsqrt(var + eps)
    w = w_ref[...].astype(jnp.float32)                 # (1, C, 1)
    b = b_ref[...].astype(jnp.float32)
    scale = inv * w                                    # (1, C, tile_hw)
    o_ref[...] = (x * scale + (b - mean * scale)).astype(o_ref.dtype)


def _layernorm_channels_last(x2d, weight, bias, eps):
    rows, C = x2d.shape
    tile_rows = _pick_row_tile(rows, C)
    grid = (pl.cdiv(rows, tile_rows),)
    return pl.pallas_call(
        functools.partial(_ln_rows_kernel, eps=eps),
        out_shape=jax.ShapeDtypeStruct((rows, C), x2d.dtype),
        grid_spec=pltpu.PrefetchScalarGridSpec(
            num_scalar_prefetch=0,
            grid=grid,
            in_specs=[
                pl.BlockSpec((tile_rows, C), lambda i: (i, 0)),
                pl.BlockSpec((1, C), lambda i: (0, 0)),
                pl.BlockSpec((1, C), lambda i: (0, 0)),
            ],
            out_specs=pl.BlockSpec((tile_rows, C), lambda i: (i, 0)),
        ),
        compiler_params=pltpu.CompilerParams(
            dimension_semantics=("parallel",),
            vmem_limit_bytes=_VMEM_LIMIT_BYTES,
        ),
    )(x2d, weight.reshape(1, C), bias.reshape(1, C))


def _layernorm_channels_first(x3d, weight, bias, eps):
    B, C, HW = x3d.shape
    tile_hw = _pick_hw_tile(HW, C)
    grid = (B, pl.cdiv(HW, tile_hw))
    return pl.pallas_call(
        functools.partial(_ln_channels_kernel, eps=eps),
        out_shape=jax.ShapeDtypeStruct((B, C, HW), x3d.dtype),
        grid_spec=pltpu.PrefetchScalarGridSpec(
            num_scalar_prefetch=0,
            grid=grid,
            in_specs=[
                pl.BlockSpec((1, C, tile_hw), lambda b, t: (b, 0, t)),
                pl.BlockSpec((1, C, 1), lambda b, t: (0, 0, 0)),
                pl.BlockSpec((1, C, 1), lambda b, t: (0, 0, 0)),
            ],
            out_specs=pl.BlockSpec((1, C, tile_hw), lambda b, t: (b, 0, t)),
        ),
        compiler_params=pltpu.CompilerParams(
            dimension_semantics=("parallel", "parallel"),
            vmem_limit_bytes=_VMEM_LIMIT_BYTES,
        ),
    )(x3d, weight.reshape(1, C, 1), bias.reshape(1, C, 1))


def layer_norm(x, weight, bias, eps=1e-6, data_format="channels_last"):
    """Matches the PyTorch ConvNeXt LayerNorm forward.

    channels_last : x is [..., C]; normalize over C (last axis).
    channels_first: x is [B, C, *spatial]; normalize over C (dim 1).
    """
    if data_format == "channels_last":
        orig_shape = x.shape
        C = orig_shape[-1]
        rows = int(np.prod(orig_shape[:-1]))
        y2d = _layernorm_channels_last(x.reshape(rows, C), weight, bias, eps)
        return y2d.reshape(orig_shape)
    elif data_format == "channels_first":
        orig_shape = x.shape
        B, C = orig_shape[0], orig_shape[1]
        HW = int(np.prod(orig_shape[2:])) if len(orig_shape) > 2 else 1
        y3d = _layernorm_channels_first(x.reshape(B, C, HW), weight, bias, eps)
        return y3d.reshape(orig_shape)
    raise NotImplementedError


# ----------------------- pure-JAX references for testing ---------------------
def _ref_channels_last(x, weight, bias, eps):
    xf = x.astype(jnp.float32)
    mean = jnp.mean(xf, axis=-1, keepdims=True)
    var = jnp.mean((xf - mean) ** 2, axis=-1, keepdims=True)
    return ((xf - mean) / jnp.sqrt(var + eps) * weight + bias).astype(x.dtype)


def _ref_channels_first(x, weight, bias, eps):
    xf = x.astype(jnp.float32)
    mean = jnp.mean(xf, axis=1, keepdims=True)
    var = jnp.mean((xf - mean) ** 2, axis=1, keepdims=True)
    y = (xf - mean) / jnp.sqrt(var + eps)
    y = weight[None, :, None, None] * y + bias[None, :, None, None]
    return y.astype(x.dtype)


if __name__ == "__main__":
    key = jax.random.PRNGKey(0)
    k1, k2, k3, k4, k5 = jax.random.split(key, 5)

    B, C, H, W = 2, 4, 16, 16
    eps = 1e-6

    # Non-trivial affine params (module inits ones/zeros; random is a stricter test).
    weight = 1.0 + 0.1 * jax.random.normal(k4, (C,), dtype=jnp.float32)
    bias = 0.1 * jax.random.normal(k5, (C,), dtype=jnp.float32)

    # channels_first input (PyTorch NCHW) — native channel-axis kernel, no transposes.
    x_cf = jax.random.normal(k1, (B, C, H, W), dtype=jnp.float32)
    y_cf = jax.block_until_ready(
        layer_norm(x_cf, weight, bias, eps, data_format="channels_first"))

    # channels_last input [b, h, w, c].
    x_cl = jax.random.normal(k2, (B, H, W, C), dtype=jnp.float32)
    y_cl = jax.block_until_ready(
        layer_norm(x_cl, weight, bias, eps, data_format="channels_last"))

    # channels_last with a ragged row count (exercises masked last block path).
    x_rg = jax.random.normal(k3, (B, 5, 7, C), dtype=jnp.float32)
    y_rg = jax.block_until_ready(
        layer_norm(x_rg, weight, bias, eps, data_format="channels_last"))

    np.testing.assert_allclose(np.asarray(y_cl),
                               np.asarray(_ref_channels_last(x_cl, weight, bias, eps)),
                               atol=1e-5, rtol=1e-5)
    np.testing.assert_allclose(np.asarray(y_rg),
                               np.asarray(_ref_channels_last(x_rg, weight, bias, eps)),
                               atol=1e-5, rtol=1e-5)
    np.testing.assert_allclose(np.asarray(y_cf),
                               np.asarray(_ref_channels_first(x_cf, weight, bias, eps)),
                               atol=1e-5, rtol=1e-5)

    print("KERNEL_OK")
</pallas_src>

<mosaic_0001>
module attributes {stable_mosaic.version = 11 : i64} {
  func.func @_ln_channels_kernel(%arg0: i32, %arg1: i32, %arg2: memref<1x4x256xf32, #tpu.memory_space<vmem>>, %arg3: memref<1x4x1xf32, #tpu.memory_space<vmem>>, %arg4: memref<1x4x1xf32, #tpu.memory_space<vmem>>, %arg5: memref<1x4x256xf32, #tpu.memory_space<vmem>>) attributes {dimension_semantics = [#tpu.dimension_semantics<parallel>, #tpu.dimension_semantics<parallel>], iteration_bounds = array<i64: 2, 1>, scalar_prefetch = 0 : i64, scratch_operands = 0 : i64, tpu.core_type = #tpu.core_type<tc>, window_params = [{transform_indices = @transform_0, window_bounds = array<i64: 1, 4, 256>}, {pipeline_mode = #tpu.pipeline_mode<synchronous>, transform_indices = @transform_1, window_bounds = array<i64: 1, 4, 1>}, {pipeline_mode = #tpu.pipeline_mode<synchronous>, transform_indices = @transform_2, window_bounds = array<i64: 1, 4, 1>}, {transform_indices = @transform_3, window_bounds = array<i64: 1, 4, 256>}]} {
    %c0 = arith.constant 0 : index
    %c0_0 = arith.constant 0 : index
    %c0_1 = arith.constant 0 : index
    %0 = vector.load %arg2[%c0, %c0_0, %c0_1] : memref<1x4x256xf32, #tpu.memory_space<vmem>>, vector<1x4x256xf32>
    %cst = arith.constant dense<0.000000e+00> : vector<1x256xf32>
    %1 = vector.multi_reduction <add>, %0, %cst [1] : vector<1x4x256xf32> to vector<1x256xf32>
    %2 = vector.shape_cast %1 : vector<1x256xf32> to vector<1x1x256xf32>
    %cst_2 = arith.constant 4.000000e+00 : f32
    %3 = vector.broadcast %cst_2 : f32 to vector<1x1x256xf32>
    %4 = arith.divf %2, %3 : vector<1x1x256xf32>
    %5 = arith.mulf %0, %0 : vector<1x4x256xf32>
    %cst_3 = arith.constant dense<0.000000e+00> : vector<1x256xf32>
    %6 = vector.multi_reduction <add>, %5, %cst_3 [1] : vector<1x4x256xf32> to vector<1x256xf32>
    %7 = vector.shape_cast %6 : vector<1x256xf32> to vector<1x1x256xf32>
    %cst_4 = arith.constant 4.000000e+00 : f32
    %8 = vector.broadcast %cst_4 : f32 to vector<1x1x256xf32>
    %9 = arith.divf %7, %8 : vector<1x1x256xf32>
    %10 = arith.mulf %4, %4 : vector<1x1x256xf32>
    %11 = arith.subf %9, %10 : vector<1x1x256xf32>
    %cst_5 = arith.constant 0.000000e+00 : f32
    %12 = vector.broadcast %cst_5 : f32 to vector<1x1x256xf32>
    %13 = arith.maximumf %11, %12 : vector<1x1x256xf32>
    %cst_6 = arith.constant 9.99999997E-7 : f32
    %14 = vector.broadcast %cst_6 : f32 to vector<1x1x256xf32>
    %15 = arith.addf %13, %14 : vector<1x1x256xf32>
    %16 = math.rsqrt %15 : vector<1x1x256xf32>
    %c0_7 = arith.constant 0 : index
    %c0_8 = arith.constant 0 : index
    %c0_9 = arith.constant 0 : index
    %17 = vector.load %arg3[%c0_7, %c0_8, %c0_9] : memref<1x4x1xf32, #tpu.memory_space<vmem>>, vector<1x4x1xf32>
    %c0_10 = arith.constant 0 : index
    %c0_11 = arith.constant 0 : index
    %c0_12 = arith.constant 0 : index
    %18 = vector.load %arg4[%c0_10, %c0_11, %c0_12] : memref<1x4x1xf32, #tpu.memory_space<vmem>>, vector<1x4x1xf32>
    %19 = vector.broadcast %16 : vector<1x1x256xf32> to vector<1x4x256xf32>
    %20 = vector.broadcast %17 : vector<1x4x1xf32> to vector<1x4x256xf32>
    %21 = arith.mulf %19, %20 : vector<1x4x256xf32>
    %22 = arith.mulf %0, %21 : vector<1x4x256xf32>
    %23 = vector.broadcast %4 : vector<1x1x256xf32> to vector<1x4x256xf32>
    %24 = arith.mulf %23, %21 : vector<1x4x256xf32>
    %25 = vector.broadcast %18 : vector<1x4x1xf32> to vector<1x4x256xf32>
    %26 = arith.subf %25, %24 : vector<1x4x256xf32>
    %27 = arith.addf %22, %26 : vector<1x4x256xf32>
    %c0_13 = arith.constant 0 : index
    %c0_14 = arith.constant 0 : index
    %c0_15 = arith.constant 0 : index
    %28 = vector.load %arg5[%c0_13, %c0_14, %c0_15] : memref<1x4x256xf32, #tpu.memory_space<vmem>>, vector<1x4x256xf32>
    tpu.vector_store %arg5[%c0_13, %c0_14, %c0_15], %27 {strides = array<i32>} : memref<1x4x256xf32, #tpu.memory_space<vmem>>, vector<1x4x256xf32>,
    return
  }
  func.func @transform_0(%arg0: i32, %arg1: i32) -> (i32, i32, i32) {
    %c0_i32 = arith.constant 0 : i32
    %c0_i32_0 = arith.constant 0 : i32
    return %arg0, %c0_i32, %arg1 : i32, i32, i32
  }
  func.func @transform_1(%arg0: i32, %arg1: i32) -> (i32, i32, i32) {
    %c0_i32 = arith.constant 0 : i32
    %c0_i32_0 = arith.constant 0 : i32
    %c0_i32_1 = arith.constant 0 : i32
    %c0_i32_2 = arith.constant 0 : i32
    return %c0_i32, %c0_i32_0, %c0_i32_1 : i32, i32, i32
  }
  func.func @transform_2(%arg0: i32, %arg1: i32) -> (i32, i32, i32) {
    %c0_i32 = arith.constant 0 : i32
    %c0_i32_0 = arith.constant 0 : i32
    %c0_i32_1 = arith.constant 0 : i32
    %c0_i32_2 = arith.constant 0 : i32
    return %c0_i32, %c0_i32_0, %c0_i32_1 : i32, i32, i32
  }
  func.func @transform_3(%arg0: i32, %arg1: i32) -> (i32, i32, i32) {
    %c0_i32 = arith.constant 0 : i32
    %c0_i32_0 = arith.constant 0 : i32
    return %arg0, %c0_i32, %arg1 : i32, i32, i32
  }
}

</mosaic_0001>

<llo_original>
// kernel: tpu_custom_call.1
$region0: #{tpu_custom_call.1}
  #allocation0 [shape = 'u32[]', space=smem, size = 0x4, offset = 0x4, fixed_abs, tag = 'smem constant byte address 0x4 - core index']
  #allocation1 [shape = 'u32[72,128]{1,0:T(1,128)}', space=vmem, size = 0x9000, scoped, tag = 'internal scratch']
  %s0 = inlined_call_operand.hbm [shape: f32[2,4,256], index: 0, kind: input, shape index: {}]
  %s1 = inlined_call_operand.vmem [shape: f32[1,4,1], index: 1, kind: input, shape index: {}]
  %s2 = inlined_call_operand.vmem [shape: f32[1,4,1], index: 2, kind: input, shape index: {}]
  %s3 = inlined_call_operand.hbm [shape: f32[2,4,256], index: 3, kind: output, shape index: {}]
  %s4 = sld [smem:[#allocation0]]
  $region49: #{tpu_custom_call.1} parent=0
    _
  %s6 = ssub.s32 1, %s4
  %s7 = scalar_select 0, %s6, %s4
  $region1: #{tpu_custom_call.1} parent=0
    #allocation2 [shape = 'u8[8192]{0}', space=vmem, size = 0x2000, scoped, tag = 'input window, operand 0']
    #allocation3 [shape = 's32[2]{0}', space=sflag, size = 0x8, scoped, tag = 'scoped memory for tpu_custom_call.1']
    #allocation4 [shape = 's32[2]{0}', space=sflag, size = 0x8, scoped, tag = 'scoped memory for tpu_custom_call.1']
    #allocation5 [shape = 'u8[8192]{0}', space=vmem, size = 0x2000, scoped, tag = 'output window, operand 0']
    %8 = vsyncpa [#allocation3], 0
    %s9 = scalar_lea.sflag [#allocation3], 1
    %10 = vsyncpa %s9, 0
    %11 = vsyncpa [#allocation4], 0
    %s12 = scalar_lea.sflag [#allocation4], 1
    %13 = vsyncpa %s12, 0
    loop: start=0, step=1, limit=4
    $region2: #{tpu_custom_call.1} parent=1 // loop_pre_header
      _
    $region3: #{tpu_custom_call.1} parent=1 // loop_header
      %s15 = sphi 0, %s19
      %p16 = scmp.ge.s32.totalorder %s15, 4
      %s22 = sphi 0, %s34
      %s23 = sphi 0, %s30
      %s24 = sphi 0, %s22
      %s25 = sphi 0, %s23
      %s26 = sphi 0, %s24
      %s27 = sphi 0, %s25
      %s39 = sphi 0, %s41
      %s42 = sphi 0, %s39
      %s43 = sphi 0, %s42
      %s59 = sphi 0, %s43
      %s63 = sphi 0, %s63
      %s65 = sphi 0, %s63
      %s66 = sphi 0, %s65
      %s80 = sphi 0, %s66
      %s84 = sphi 0, %s84
      %s86 = sphi 0, %s84
      %s87 = sphi 0, %s86
      %s101 = sphi 0, %s87
      %s109 = sphi 0, %s111
      %s112 = sphi 0, %s109
      %s113 = sphi 0, %s112
      %s129 = sphi 0, %s113
    $region4: #{tpu_custom_call.1} parent=1 // loop_header_branch
      %18 = sbr.rel (%p16) target = $region8
    $region5: #{tpu_custom_call.1} parent=1 // loop_body
      %s20 = ssub.s32 %s15, 1
      %s21 = ssub.s32 %s15, 2
      %s28 = sadd.s32 1, %s23
      %p29 = scmp.ge.s32.totalorder %s28, 1
      %s30 = scalar_select %p29, 0, %s28
      %s31 = sadd.s32 1, %s22
      %s32 = scalar_select %p29, %s31, %s22
      %p33 = scmp.ge.s32.totalorder %s32, 2
      %s34 = scalar_select %p33, 0, %s32
      %s35 = ssub.s32 %s22, %s34
      %s36 = ssub.s32 %s23, %s30
      %s37 = sor.u32 %s35, %s36
      %p38 = scmp.eq.s32.totalorder %s37, 0
      %s40 = sadd.s32 %s39, 1
      %s41 = scalar_select %p38, %s39, %s40
      %p44 = pneg %p38
      %p45 = scmp.eq.s32.totalorder %s15, 1
      %p46 = por %p44, %p45
      %p47 = scmp.ne.s32.totalorder %s39, %s42
      %p48 = scmp.eq.s32.totalorder %s15, 0
      %p49 = por %p47, %p48
      %p50 = scmp.ne.s32.totalorder %s39, %s42
      %p51 = scmp.eq.s32.totalorder %s20, 1
      %p52 = por %p50, %p51
      %p53 = scmp.ne.s32.totalorder %s42, %s43
      %p54 = scmp.eq.s32.totalorder %s20, 0
      %p55 = por %p53, %p54
      %p56 = scmp.ne.s32.totalorder %s42, %s43
      %p57 = scmp.eq.s32.totalorder %s21, 1
      %p58 = por %p56, %p57
      %p60 = scmp.ne.s32.totalorder %s43, %s59
      %p61 = scmp.eq.s32.totalorder %s21, 0
      %p62 = por %p60, %p61
      %s64 = sadd.s32 %s63, 1
      %p67 = scmp.eq.s32.totalorder %s15, 1
      %p68 = scmp.ne.s32.totalorder %s63, %s65
      %p69 = scmp.eq.s32.totalorder %s15, 0
      %p70 = por %p68, %p69
      %p71 = scmp.ne.s32.totalorder %s63, %s65
      %p72 = scmp.eq.s32.totalorder %s20, 1
      %p73 = por %p71, %p72
      %p74 = scmp.ne.s32.totalorder %s65, %s66
      %p75 = scmp.eq.s32.totalorder %s20, 0
      %p76 = por %p74, %p75
      %p77 = scmp.ne.s32.totalorder %s65, %s66
      %p78 = scmp.eq.s32.totalorder %s21, 1
      %p79 = por %p77, %p78
      %p81 = scmp.ne.s32.totalorder %s66, %s80
      %p82 = scmp.eq.s32.totalorder %s21, 0
      %p83 = por %p81, %p82
      %s85 = sadd.s32 %s84, 1
      %p88 = scmp.eq.s32.totalorder %s15, 1
      %p89 = scmp.ne.s32.totalorder %s84, %s86
      %p90 = scmp.eq.s32.totalorder %s15, 0
      %p91 = por %p89, %p90
      %p92 = scmp.ne.s32.totalorder %s84, %s86
      %p93 = scmp.eq.s32.totalorder %s20, 1
      %p94 = por %p92, %p93
      %p95 = scmp.ne.s32.totalorder %s86, %s87
      %p96 = scmp.eq.s32.totalorder %s20, 0
      %p97 = por %p95, %p96
      %p98 = scmp.ne.s32.totalorder %s86, %s87
      %p99 = scmp.eq.s32.totalorder %s21, 1
      %p100 = por %p98, %p99
      %p102 = scmp.ne.s32.totalorder %s87, %s101
      %p103 = scmp.eq.s32.totalorder %s21, 0
      %p104 = por %p102, %p103
      %s105 = ssub.s32 %s22, %s34
      %s106 = ssub.s32 %s23, %s30
      %s107 = sor.u32 %s105, %s106
      %p108 = scmp.eq.s32.totalorder %s107, 0
      %s110 = sadd.s32 %s109, 1
      %s111 = scalar_select %p108, %s109, %s110
      %p114 = pneg %p108
      %p115 = scmp.eq.s32.totalorder %s15, 1
      %p116 = por %p114, %p115
      %p117 = scmp.ne.s32.totalorder %s109, %s112
      %p118 = scmp.eq.s32.totalorder %s15, 0
      %p119 = por %p117, %p118
      %p120 = scmp.ne.s32.totalorder %s109, %s112
      %p121 = scmp.eq.s32.totalorder %s20, 1
      %p122 = por %p120, %p121
      %p123 = scmp.ne.s32.totalorder %s112, %s113
      %p124 = scmp.eq.s32.totalorder %s20, 0
      %p125 = por %p123, %p124
      %p126 = scmp.ne.s32.totalorder %s112, %s113
      %p127 = scmp.eq.s32.totalorder %s21, 1
      %p128 = por %p126, %p127
      %p130 = scmp.ne.s32.totalorder %s113, %s129
      %p131 = scmp.eq.s32.totalorder %s21, 0
      %p132 = por %p130, %p131
      %p133 = scmp.le.s32.totalorder 1, %s15
      %p134 = scmp.lt.s32.totalorder %s15, 3
      %p135 = pnand %p133, %p134
      %p136 = pneg %p135
      // Predicated region
      $region9: #{tpu_custom_call.1} parent=5 // pred_check
        _
      $region10: #{tpu_custom_call.1} parent=5 // pred_check_branch
        %138 = sbr.rel (%p135) target = $region12
      $region11: #{tpu_custom_call.1} parent=5 // pred_region
        %s139 = ssub.s32 %s15, 1
        // Predicated region
        $region13: #{tpu_custom_call.1} parent=11 // pred_check
          %p140 = pneg %p76
        $region14: #{tpu_custom_call.1} parent=11 // pred_check_branch
          %142 = sbr.rel (%p140) target = $region16
        $region15: #{tpu_custom_call.1} parent=11 // pred_region
          _
        $region16: #{tpu_custom_call.1} parent=11 // pred_fallthru
          _
        // Predicated region
        $region17: #{tpu_custom_call.1} parent=11 // pred_check
          %p143 = pneg %p97
        $region18: #{tpu_custom_call.1} parent=11 // pred_check_branch
          %145 = sbr.rel (%p143) target = $region20
        $region19: #{tpu_custom_call.1} parent=11 // pred_region
          _
        $region20: #{tpu_custom_call.1} parent=11 // pred_fallthru
          _
      $region12: #{tpu_custom_call.1} parent=5 // pred_fallthru
        _
      %p146 = scmp.lt.s32.totalorder %s15, 2
      // Predicated region
      $region21: #{tpu_custom_call.1} parent=5 // pred_check
        %p147 = pneg %p146
      $region22: #{tpu_custom_call.1} parent=5 // pred_check_branch
        %149 = sbr.rel (%p147) target = $region24
      $region23: #{tpu_custom_call.1} parent=5 // pred_region
        // Predicated region
        $region25: #{tpu_custom_call.1} parent=23 // pred_check
          %p150 = pneg %p49
        $region26: #{tpu_custom_call.1} parent=23 // pred_check_branch
          %152 = sbr.rel (%p150) target = $region28
        $region27: #{tpu_custom_call.1} parent=23 // pred_region
          %s153 = sand.u32 %s39, 1
          %s154 = scalar_lea.sflag [#allocation3], %s153
          %s155 = sand.u32 %s39, 1
          %s156 = smul.addr %s155, 8
          %s157 = scalar_lea.vmem [#allocation2], %s156
          %s158 = smul.u32 2, %s23
          %160 = vsyncadd %s154, 0
          %s161 = smul.addr %s22, 2
          %s162 = sadd.s32 %s158, %s161
          %s163 = smul.addr %s162, 4
          %s164 = scalar_lea.hbm %s0, %s163
          %s166 = sshll.u32 %s164, 4
          %s167 = int_to_ptr.hbm [resolvable:$true] %s166
          %s168 = sshll.u32 %s157, 4
          %s169 = int_to_ptr.vmem [resolvable:$true] %s168
          %171 = dma.hbm_to_vmem [thread:$0]  %s167, 128, %s169, %s154
        $region28: #{tpu_custom_call.1} parent=23 // pred_fallthru
          _
      $region24: #{tpu_custom_call.1} parent=5 // pred_fallthru
        _
      %p172 = scmp.le.s32.totalorder 1, %s15
      %p173 = scmp.lt.s32.totalorder %s15, 3
      %p174 = pnand %p172, %p173
      %p175 = pneg %p174
      // Predicated region
      $region29: #{tpu_custom_call.1} parent=5 // pred_check
        _
      $region30: #{tpu_custom_call.1} parent=5 // pred_check_branch
        %177 = sbr.rel (%p174) target = $region32
      $region31: #{tpu_custom_call.1} parent=5 // pred_region
        %s178 = ssub.s32 %s15, 1
        %s179 = sand.u32 %s42, 1
        %s180 = scalar_lea.sflag [#allocation3], %s179
        %s181 = sand.u32 %s42, 1
        %s182 = smul.addr %s181, 8
        %s183 = scalar_lea.vmem [#allocation2], %s182
        // Predicated region
        $region33: #{tpu_custom_call.1} parent=31 // pred_check
          %p184 = pneg %p55
        $region34: #{tpu_custom_call.1} parent=31 // pred_check_branch
          %186 = sbr.rel (%p184) target = $region36
        $region35: #{tpu_custom_call.1} parent=31 // pred_region
          %188 = dma.done %s180, 128
        $region36: #{tpu_custom_call.1} parent=31 // pred_fallthru
          _
        %s189 = sand.u32 %s42, 1
        %s190 = scalar_lea.sflag [#allocation3], %s189
        %s191 = sand.u32 %s42, 1
        %s192 = smul.addr %s191, 8
        %s193 = scalar_lea.vmem [#allocation2], %s192
        %p194 = pneg %p55
        %p195 = pneg %p52
        %p196 = pneg %p76
        %p197 = pneg %p73
        %p198 = pneg %p97
        %p199 = pneg %p94
        %p200 = pneg %p125
        %p201 = pneg %p122
        %s202 = sand.u32 %s112, 1
        %s203 = scalar_lea.sflag [#allocation4], %s202
        %s204 = sand.u32 %s112, 1
        %s205 = smul.addr %s204, 8
        %s206 = scalar_lea.vmem [#allocation5], %s205
        %s207 = smul.u32 2, %s25
        %s208 = smul.u32 2, %s25
        %v209 = vld [vmem:[%s183] sm:$0xff]
        %211 = vst [vmem:[#allocation1] ss:$2 sm:$0xff] %v209
        %v212 = vld.sshfl [vmem:[#allocation1] sm:$0xff pattern:$0x75316420]
        %v213 = vld.sshfl [vmem:[#allocation1 + $0x8] sm:$0xff pattern:$0x75316420]
        %vm216 = vcmask 1043456
        %v217 = vsel %vm216, %v212, 0.0
        %v218 = vrot.slane %v217, 4
        %v219 = vadd.f32 %v217, %v218
        %v220 = vrot.slane %v219, 2
        %v221 = vadd.f32 %v219, %v220
        %v222 = vrot.slane %v221, 1
        %v223 = vadd.f32 %v221, %v222
        %v224 = vsel %vm216, %v213, 0.0
        %v225 = vrot.slane %v224, 4
        %v226 = vadd.f32 %v224, %v225
        %v227 = vrot.slane %v226, 2
        %v228 = vadd.f32 %v226, %v227
        %v229 = vrot.slane %v228, 1
        %v230 = vadd.f32 %v228, %v229
        %v231 = vrcp.pop 4.0
        %v232 = vmul.f32 4.0, %v231
        %v233 = vsub.f32 1.0, %v232
        %v234 = vmul.f32 %v231, %v233
        %v235 = vadd.f32 %v231, %v234
        %vm236 = vweird.f32 %v231
        %v237 = vsel %vm236, %v231, %v235
        %v238 = vmul.f32 %v223, %v237
        %v239 = vmul.f32 %v230, %v237
        %v240 = vmul.f32 %v209, %v209
        %242 = vst [vmem:[#allocation1] ss:$2 sm:$0xff] %v240
        %v243 = vld.sshfl [vmem:[#allocation1] sm:$0xff pattern:$0x75316420]
        %v244 = vld.sshfl [vmem:[#allocation1 + $0x8] sm:$0xff pattern:$0x75316420]
        %v247 = vsel %vm216, %v243, 0.0
        %v248 = vrot.slane %v247, 4
        %v249 = vadd.f32 %v247, %v248
        %v250 = vrot.slane %v249, 2
        %v251 = vadd.f32 %v249, %v250
        %v252 = vrot.slane %v251, 1
        %v253 = vadd.f32 %v251, %v252
        %v254 = vsel %vm216, %v244, 0.0
        %v255 = vrot.slane %v254, 4
        %v256 = vadd.f32 %v254, %v255
        %v257 = vrot.slane %v256, 2
        %v258 = vadd.f32 %v256, %v257
        %v259 = vrot.slane %v258, 1
        %v260 = vadd.f32 %v258, %v259
        %v261 = vmul.f32 %v253, %v237
        %v262 = vmul.f32 %v260, %v237
        %v263 = vmul.f32 %v238, %v238
        %v264 = vmul.f32 %v239, %v239
        %v265 = vsub.f32 %v261, %v263
        %v266 = vsub.f32 %v262, %v264
        %v267 = vmax.f32 %v265, 0.0
        %v268 = vmax.f32 %v266, 0.0
        %v269 = vadd.f32 %v267, 1e-06
        %v270 = vadd.f32 %v268, 1e-06
        %v271 = vrsqrt.pop %v269
        %v272 = vmul.f32 %v271, %v269
        %v273 = vmul.f32 %v272, %v271
        %v274 = vmul.f32 0.5, %v273
        %v275 = vsub.f32 1.5, %v274
        %v276 = vmul.f32 %v271, %v275
        %vm277 = vweird.f32 %v269
        %vm278 = vweird.f32 %v271
        %vm279 = vmor %vm277, %vm278
        %v280 = vsel %vm279, %v271, %v276
        %v281 = vrsqrt.pop %v270
        %v282 = vmul.f32 %v281, %v270
        %v283 = vmul.f32 %v282, %v281
        %v284 = vmul.f32 0.5, %v283
        %v285 = vsub.f32 1.5, %v284
        %v286 = vmul.f32 %v281, %v285
        %vm287 = vweird.f32 %v270
        %vm288 = vweird.f32 %v281
        %vm289 = vmor %vm287, %vm288
        %v290 = vsel %vm289, %v281, %v286
        %v291 = vld [vmem:[%s1] sm:$0xf]
        %v292 = vld [vmem:[%s2] sm:$0xf]
        %294 = vset.pattern.permute.xlu0 0
        %295 = vperm.xlu0 %294, %v291
        %v296 = vpop.permute.xlu0 %295
        %v298 = vmul.f32 %v280, %v296
        %v299 = vmul.f32 %v290, %v296
        %v302 = vrot.slane %v299, 4
        %v303 = vsel %vm216, %v298, %v302
        %v305 = vmul.f32 %v209, %v303
        %v306 = vmul.f32 %v238, %v298
        %v307 = vmul.f32 %v239, %v299
        %309 = vset.pattern.permute.xlu0 0
        %310 = vperm.xlu0 %309, %v292
        %v311 = vpop.permute.xlu0 %310
        %v313 = vsub.f32 %v311, %v306
        %v314 = vsub.f32 %v311, %v307
        %v317 = vrot.slane %v314, 4
        %v318 = vsel %vm216, %v313, %v317
        %v320 = vadd.f32 %v305, %v318
        %321 = vst [vmem:[%s206] sm:$0xff] %v320
        %s322 = sand.u32 %s112, 1
        %s323 = scalar_lea.sflag [#allocation4], %s322
        %s324 = sand.u32 %s112, 1
        %s325 = smul.addr %s324, 8
        %s326 = scalar_lea.vmem [#allocation5], %s325
        // Predicated region
        $region37: #{tpu_custom_call.1} parent=31 // pred_check
          %p327 = pneg %p122
        $region38: #{tpu_custom_call.1} parent=31 // pred_check_branch
          %329 = sbr.rel (%p327) target = $region40
        $region39: #{tpu_custom_call.1} parent=31 // pred_region
          %s330 = smul.u32 2, %s25
          %332 = vsyncadd %s323, 0
          %s333 = smul.addr %s24, 2
          %s334 = sadd.s32 %s330, %s333
          %s335 = smul.addr %s334, 4
          %s336 = scalar_lea.hbm %s3, %s335
          %s338 = sshll.u32 %s326, 4
          %s339 = int_to_ptr.vmem [resolvable:$true] %s338
          %s340 = sshll.u32 %s336, 4
          %s341 = int_to_ptr.hbm [resolvable:$true] %s340
          %343 = dma.vmem_to_hbm [thread:$0]  %s339, 128, %s341, %s323
        $region40: #{tpu_custom_call.1} parent=31 // pred_fallthru
          _
      $region32: #{tpu_custom_call.1} parent=5 // pred_fallthru
        _
      %p344 = scmp.le.s32.totalorder 2, %s15
      // Predicated region
      $region41: #{tpu_custom_call.1} parent=5 // pred_check
        %p345 = pneg %p344
      $region42: #{tpu_custom_call.1} parent=5 // pred_check_branch
        %347 = sbr.rel (%p345) target = $region44
      $region43: #{tpu_custom_call.1} parent=5 // pred_region
        %s348 = ssub.s32 %s15, 2
        // Predicated region
        $region45: #{tpu_custom_call.1} parent=43 // pred_check
          %p349 = pneg %p128
        $region46: #{tpu_custom_call.1} parent=43 // pred_check_branch
          %351 = sbr.rel (%p349) target = $region48
        $region47: #{tpu_custom_call.1} parent=43 // pred_region
          %s352 = sand.u32 %s113, 1
          %s353 = scalar_lea.sflag [#allocation4], %s352
          %s354 = sand.u32 %s113, 1
          %s355 = smul.addr %s354, 8
          %s356 = scalar_lea.vmem [#allocation5], %s355
          %358 = dma.done %s353, 128
        $region48: #{tpu_custom_call.1} parent=43 // pred_fallthru
          _
      $region44: #{tpu_custom_call.1} parent=5 // pred_fallthru
        _
    $region6: #{tpu_custom_call.1} parent=1 // loop_footer
      %s19 = sadd.s32 1, %s15
    $region7: #{tpu_custom_call.1} parent=1 // loop_footer_branch
      %14 = sbr.rel target = $region3
    $region8: #{tpu_custom_call.1} parent=1 // loop_exit
      _
    %359 = vsyncpa [#allocation3], 1
    %s360 = scalar_lea.sflag [#allocation3], 1
    %361 = vsyncpa %s360, 1
    %362 = vsyncpa [#allocation4], 1
    %s363 = scalar_lea.sflag [#allocation4], 1
    %364 = vsyncpa %s363, 1

</llo_original>
